<compile_context>
chip_gen: v7x
topology: tpu7x:2x2x1
jax: 0.10.0
libtpu: 0.0.40
codegen_flags: <defaults>
</compile_context>

<pallas_src>
import functools

import jax
import jax.numpy as jnp
from jax.experimental import pallas as pl
from jax.experimental.pallas import tpu as pltpu


def _poe_kernel(mu_ref, logvar_ref, pd_mu_ref, pd_logvar_ref, *, eps):
    # mu_ref/logvar_ref: (E, tB, tD) in VMEM; outputs: (tB, tD).
    mu = mu_ref[...].astype(jnp.float32)
    logvar = logvar_ref[...].astype(jnp.float32)

    # Per-expert precision. exp -> EUP slot (does not consume VALU).
    T = 1.0 / (jnp.exp(logvar) + eps)

    # Universal prior expert N(0,1) folded analytically:
    #   mu_prior = 0, logvar_prior = 0 -> T_prior = 1/(1+eps), mu_prior*T = 0.
    prior_T = 1.0 / (1.0 + eps)

    sum_T = jnp.sum(T, axis=0) + prior_T        # leading-axis VPU reduction
    sum_muT = jnp.sum(mu * T, axis=0)           # prior contributes zero

    pd_mu = sum_muT / sum_T                     # exact divide (keeps 1e-5 tol)
    pd_logvar = -jnp.log(sum_T)                 # == log(1/sum_T), fewer ops

    pd_mu_ref[...] = pd_mu.astype(pd_mu_ref.dtype)
    pd_logvar_ref[...] = pd_logvar.astype(pd_logvar_ref.dtype)


def _choose_tiles(E, B, D, in_dtype, out_dtype, budget_bytes=8 * 1024 * 1024):
    """Pick (tB, tD): lane tile a multiple of 128 (as large as possible),
    sublane tile a multiple of 8, keeping the double-buffered VMEM working set
    under `budget_bytes`.  Falls back to full extents for small / non-aligned
    dims (Pallas allows sub-(8,128) blocks when block_shape == array dims)."""
    in_b = jnp.dtype(in_dtype).itemsize
    out_b = jnp.dtype(out_dtype).itemsize

    tD = D
    for cand in (1024, 512, 256, 128):
        # 2 inputs + 2 outputs, each double-buffered; need room for >= 8 rows.
        per_row = 2 * (2 * E * in_b + 2 * out_b) * cand
        if D % cand == 0 and 8 * per_row <= budget_bytes:
            tD = cand
            break

    # bytes per unit of tB at the chosen tD.
    per_row = 2 * (2 * E * in_b + 2 * out_b) * tD

    tB = B
    for cand in (1024, 512, 256, 128, 64, 32, 16, 8):
        if B % cand == 0 and cand * per_row <= budget_bytes:
            tB = cand
            break
    return tB, tD


def product_of_experts(mus, logvars, eps=1e-8):
    """PoE forward.

    Args:
      mus:     (E, B, D) stacked expert means     (== the list of E tensors in torch)
      logvars: (E, B, D) stacked expert log-vars
      eps:     epsilon added to the variance.
    Returns:
      (pd_mu, pd_logvar), each (B, D).  The universal N(0,1) prior expert is
      included implicitly (folded analytically inside the kernel).
    """
    E, B, D = mus.shape
    out_dtype = mus.dtype
    tB, tD = _choose_tiles(E, B, D, mus.dtype, out_dtype)

    kernel = functools.partial(_poe_kernel, eps=eps)
    grid = (pl.cdiv(B, tB), pl.cdiv(D, tD))

    pd_mu, pd_logvar = pl.pallas_call(
        kernel,
        out_shape=(
            jax.ShapeDtypeStruct((B, D), out_dtype),
            jax.ShapeDtypeStruct((B, D), out_dtype),
        ),
        grid=grid,
        in_specs=[
            pl.BlockSpec((E, tB, tD), lambda i, j: (0, i, j)),
            pl.BlockSpec((E, tB, tD), lambda i, j: (0, i, j)),
        ],
        out_specs=(
            pl.BlockSpec((tB, tD), lambda i, j: (i, j)),
            pl.BlockSpec((tB, tD), lambda i, j: (i, j)),
        ),
        compiler_params=pltpu.CompilerParams(
            dimension_semantics=("parallel", "parallel"),
        ),
    )(mus, logvars)
    return pd_mu, pd_logvar


def _poe_reference(mus, logvars, eps=1e-8):
    """Pure-JAX reference mirroring the PyTorch forward exactly
    (explicit prior-expert concatenation)."""
    E, B, D = mus.shape
    prior = jnp.zeros((1, B, D), dtype=jnp.float32)
    mu = jnp.concatenate([prior, mus.astype(jnp.float32)], axis=0)
    logvar = jnp.concatenate([prior, logvars.astype(jnp.float32)], axis=0)
    var = jnp.exp(logvar) + eps
    T = 1.0 / var
    pd_mu = jnp.sum(mu * T, axis=0) / jnp.sum(T, axis=0)
    pd_var = 1.0 / jnp.sum(T, axis=0)
    return pd_mu.astype(mus.dtype), jnp.log(pd_var).astype(mus.dtype)


if __name__ == "__main__":
    key = jax.random.PRNGKey(0)

    # Case 1: small shapes consistent with the module (3 experts, batch=2, hidden=32).
    # Blocks fall back to full extents (sub-(8,128) allowed when block == array).
    E, B, D = 3, 2, 32
    k_mu, k_lv = jax.random.split(key)
    mus = jax.random.normal(k_mu, (E, B, D), dtype=jnp.float32)
    logvars = 0.5 * jax.random.normal(k_lv, (E, B, D), dtype=jnp.float32)

    pd_mu, pd_logvar = product_of_experts(mus, logvars)
    jax.block_until_ready((pd_mu, pd_logvar))

    ref_mu, ref_logvar = _poe_reference(mus, logvars)
    assert pd_mu.shape == (B, D) and pd_logvar.shape == (B, D)
    assert jnp.allclose(pd_mu, ref_mu, atol=1e-5, rtol=1e-5)
    assert jnp.allclose(pd_logvar, ref_logvar, atol=1e-5, rtol=1e-5)

    # Case 2: (8,128)-aligned shapes that exercise the real tiled / pipelined path.
    E2, B2, D2 = 3, 16, 256
    k_mu2, k_lv2 = jax.random.split(jax.random.PRNGKey(1))
    mus2 = jax.random.normal(k_mu2, (E2, B2, D2), dtype=jnp.float32)
    logvars2 = 0.5 * jax.random.normal(k_lv2, (E2, B2, D2), dtype=jnp.float32)

    pd_mu2, pd_logvar2 = product_of_experts(mus2, logvars2)
    jax.block_until_ready((pd_mu2, pd_logvar2))

    ref_mu2, ref_logvar2 = _poe_reference(mus2, logvars2)
    assert jnp.allclose(pd_mu2, ref_mu2, atol=1e-5, rtol=1e-5)
    assert jnp.allclose(pd_logvar2, ref_logvar2, atol=1e-5, rtol=1e-5)

    print("KERNEL_OK")
</pallas_src>

<mosaic_0001>
module attributes {stable_mosaic.version = 11 : i64} {
  func.func @_poe_kernel(%arg0: i32, %arg1: i32, %arg2: memref<3x2x32xf32, #tpu.memory_space<vmem>>, %arg3: memref<3x2x32xf32, #tpu.memory_space<vmem>>, %arg4: memref<2x32xf32, #tpu.memory_space<vmem>>, %arg5: memref<2x32xf32, #tpu.memory_space<vmem>>) attributes {dimension_semantics = [#tpu.dimension_semantics<parallel>, #tpu.dimension_semantics<parallel>], iteration_bounds = array<i64: 1, 1>, scalar_prefetch = 0 : i64, scratch_operands = 0 : i64, tpu.core_type = #tpu.core_type<tc>, window_params = [{transform_indices = @transform_0, window_bounds = array<i64: 3, 2, 32>}, {transform_indices = @transform_1, window_bounds = array<i64: 3, 2, 32>}, {transform_indices = @transform_2, window_bounds = array<i64: 2, 32>}, {transform_indices = @transform_3, window_bounds = array<i64: 2, 32>}]} {
    %c0 = arith.constant 0 : index
    %c0_0 = arith.constant 0 : index
    %c0_1 = arith.constant 0 : index
    %0 = vector.load %arg2[%c0, %c0_0, %c0_1] : memref<3x2x32xf32, #tpu.memory_space<vmem>>, vector<3x2x32xf32>
    %c0_2 = arith.constant 0 : index
    %c0_3 = arith.constant 0 : index
    %c0_4 = arith.constant 0 : index
    %1 = vector.load %arg3[%c0_2, %c0_3, %c0_4] : memref<3x2x32xf32, #tpu.memory_space<vmem>>, vector<3x2x32xf32>
    %2 = math.exp %1 : vector<3x2x32xf32>
    %cst = arith.constant 9.99999993E-9 : f32
    %3 = vector.broadcast %cst : f32 to vector<3x2x32xf32>
    %4 = arith.addf %2, %3 : vector<3x2x32xf32>
    %cst_5 = arith.constant 1.000000e+00 : f32
    %5 = vector.broadcast %cst_5 : f32 to vector<3x2x32xf32>
    %6 = arith.divf %5, %4 : vector<3x2x32xf32>
    %cst_6 = arith.constant dense<0.000000e+00> : vector<2x32xf32>
    %7 = vector.multi_reduction <add>, %6, %cst_6 [0] : vector<3x2x32xf32> to vector<2x32xf32>
    %cst_7 = arith.constant 1.000000e+00 : f32
    %8 = vector.broadcast %cst_7 : f32 to vector<2x32xf32>
    %9 = arith.addf %7, %8 : vector<2x32xf32>
    %10 = arith.mulf %0, %6 : vector<3x2x32xf32>
    %cst_8 = arith.constant dense<0.000000e+00> : vector<2x32xf32>
    %11 = vector.multi_reduction <add>, %10, %cst_8 [0] : vector<3x2x32xf32> to vector<2x32xf32>
    %12 = arith.divf %11, %9 : vector<2x32xf32>
    %13 = math.log %9 : vector<2x32xf32>
    %cst_9 = arith.constant 0.000000e+00 : f32
    %14 = vector.broadcast %cst_9 : f32 to vector<2x32xf32>
    %15 = arith.subf %14, %13 : vector<2x32xf32>
    %c0_10 = arith.constant 0 : index
    %c0_11 = arith.constant 0 : index
    %16 = vector.load %arg4[%c0_10, %c0_11] : memref<2x32xf32, #tpu.memory_space<vmem>>, vector<2x32xf32>
    tpu.vector_store %arg4[%c0_10, %c0_11], %12 {strides = array<i32>} : memref<2x32xf32, #tpu.memory_space<vmem>>, vector<2x32xf32>,
    %c0_12 = arith.constant 0 : index
    %c0_13 = arith.constant 0 : index
    %17 = vector.load %arg5[%c0_12, %c0_13] : memref<2x32xf32, #tpu.memory_space<vmem>>, vector<2x32xf32>
    tpu.vector_store %arg5[%c0_12, %c0_13], %15 {strides = array<i32>} : memref<2x32xf32, #tpu.memory_space<vmem>>, vector<2x32xf32>,
    return
  }
  func.func @transform_0(%arg0: i32, %arg1: i32) -> (i32, i32, i32) {
    %c0_i32 = arith.constant 0 : i32
    %c0_i32_0 = arith.constant 0 : i32
    return %c0_i32, %arg0, %arg1 : i32, i32, i32
  }
  func.func @transform_1(%arg0: i32, %arg1: i32) -> (i32, i32, i32) {
    %c0_i32 = arith.constant 0 : i32
    %c0_i32_0 = arith.constant 0 : i32
    return %c0_i32, %arg0, %arg1 : i32, i32, i32
  }
  func.func @transform_2(%arg0: i32, %arg1: i32) -> (i32, i32) {
    %c0_i32 = arith.constant 0 : i32
    return %arg0, %arg1 : i32, i32
  }
  func.func @transform_3(%arg0: i32, %arg1: i32) -> (i32, i32) {
    %c0_i32 = arith.constant 0 : i32
    return %arg0, %arg1 : i32, i32
  }
}

</mosaic_0001>

<llo_original>
// kernel: tpu_custom_call.1
$region0: #{tpu_custom_call.1}
  #allocation0 [shape = 'u32[]', space=smem, size = 0x4, offset = 0x4, fixed_abs, tag = 'smem constant byte address 0x4 - core index']
  #allocation1 [shape = 'u32[144,128]{1,0:T(1,128)}', space=vmem, size = 0x12000, scoped, tag = 'internal scratch']
  %s0 = inlined_call_operand.hbm [shape: f32[3,2,32], index: 0, kind: input, shape index: {}]
  %s1 = inlined_call_operand.hbm [shape: f32[3,2,32], index: 1, kind: input, shape index: {}]
  %s2 = inlined_call_operand.hbm [shape: f32[2,32], index: 2, kind: output, shape index: {0}]
  %s3 = inlined_call_operand.hbm [shape: f32[2,32], index: 3, kind: output, shape index: {1}]
  %4 = xla_tuple %s2, %s3
  %s5 = sld [smem:[#allocation0]]
  $region34: #{tpu_custom_call.1} parent=0
    _
  %s7 = ssub.s32 1, %s5
  %s8 = scalar_select 0, %s7, %s5
  $region1: #{tpu_custom_call.1} parent=0
    #allocation2 [shape = 'u8[3072]{0}', space=vmem, size = 0xc00, scoped, tag = 'input window, operand 0, single buffered']
    #allocation3 [shape = 's32[1]{0}', space=sflag, size = 0x4, scoped, tag = 'scoped memory for tpu_custom_call.1']
    #allocation4 [shape = 's32[1]{0}', space=sflag, size = 0x4, scoped, tag = 'scoped memory for tpu_custom_call.1']
    #allocation5 [shape = 'u8[3072]{0}', space=vmem, size = 0xc00, scoped, tag = 'input window, operand 1, single buffered']
    #allocation6 [shape = 's32[1]{0}', space=sflag, size = 0x4, scoped, tag = 'scoped memory for tpu_custom_call.1']
    #allocation7 [shape = 'u8[1024]{0}', space=vmem, size = 0x400, scoped, tag = 'output window, operand 0, single buffered']
    #allocation8 [shape = 'u8[1024]{0}', space=vmem, size = 0x400, scoped, tag = 'output window, operand 1, single buffered']
    #allocation9 [shape = 's32[1]{0}', space=sflag, size = 0x4, scoped, tag = 'scoped memory for tpu_custom_call.1']
    %9 = vsyncpa [#allocation3], 0
    %10 = vsyncpa [#allocation6], 0
    %11 = vsyncpa [#allocation4], 0
    %12 = vsyncpa [#allocation9], 0
    // Predicated region
    $region2: #{tpu_custom_call.1} parent=1 // pred_check
      _
    $region3: #{tpu_custom_call.1} parent=1 // pred_check_branch
      %14 = sbr.rel (0) target = $region5
    $region4: #{tpu_custom_call.1} parent=1 // pred_region
      %s16 = ssub.s32 96, 96
      %17 = vsyncadd [#allocation3], %s16
      %s18 = sshll.u32 [#allocation2], 4
      %s19 = int_to_ptr.vmem [resolvable:$true] %s18
      %24 = dma.hbm_to_vmem [thread:$0]  %s0, 96, %s19, [#allocation3], 32, 32, 2
    $region5: #{tpu_custom_call.1} parent=1 // pred_fallthru
      _
    // Predicated region
    $region6: #{tpu_custom_call.1} parent=1 // pred_check
      _
    $region7: #{tpu_custom_call.1} parent=1 // pred_check_branch
      %26 = sbr.rel (0) target = $region9
    $region8: #{tpu_custom_call.1} parent=1 // pred_region
      %s28 = ssub.s32 96, 96
      %29 = vsyncadd [#allocation6], %s28
      %s30 = sshll.u32 [#allocation5], 4
      %s31 = int_to_ptr.vmem [resolvable:$true] %s30
      %36 = dma.hbm_to_vmem [thread:$0]  %s1, 96, %s31, [#allocation6], 32, 32, 2
    $region9: #{tpu_custom_call.1} parent=1 // pred_fallthru
      _
    // Predicated region
    $region10: #{tpu_custom_call.1} parent=1 // pred_check
      _
    $region11: #{tpu_custom_call.1} parent=1 // pred_check_branch
      %38 = sbr.rel (0) target = $region13
    $region12: #{tpu_custom_call.1} parent=1 // pred_region
      %39 = dma.done [#allocation3], 96
    $region13: #{tpu_custom_call.1} parent=1 // pred_fallthru
      _
    // Predicated region
    $region14: #{tpu_custom_call.1} parent=1 // pred_check
      _
    $region15: #{tpu_custom_call.1} parent=1 // pred_check_branch
      %41 = sbr.rel (0) target = $region17
    $region16: #{tpu_custom_call.1} parent=1 // pred_region
      %42 = dma.done [#allocation6], 96
    $region17: #{tpu_custom_call.1} parent=1 // pred_fallthru
      _
    %v43 = vld [vmem:[#allocation2] sm:$0x3]
    %v44 = vld [vmem:[#allocation2 + $0x2] sm:$0x3]
    %v45 = vld [vmem:[#allocation2 + $0x4] sm:$0x3]
    %v46 = vld [vmem:[#allocation5] sm:$0x3]
    %v47 = vld [vmem:[#allocation5 + $0x2] sm:$0x3]
    %v48 = vld [vmem:[#allocation5 + $0x4] sm:$0x3]
    %v49 = vmul.f32 %v46, 1.442695
    %v50 = vpow.pop %v49
    %v51 = vmul.f32 %v47, 1.442695
    %v52 = vpow.pop %v51
    %v53 = vmul.f32 %v48, 1.442695
    %v54 = vpow.pop %v53
    %v55 = vadd.f32 %v50, 1e-08
    %v56 = vadd.f32 %v52, 1e-08
    %v57 = vadd.f32 %v54, 1e-08
    %v58 = vrcp.pop %v55
    %v59 = vmul.f32 1.0, %v58
    %v60 = vrcp.pop %v56
    %v61 = vmul.f32 1.0, %v60
    %v62 = vrcp.pop %v57
    %v63 = vmul.f32 1.0, %v62
    %vm64 = vcmask 254976
    %v65 = vsel %vm64, %v59, 0.0
    %v66 = vsel %vm64, %v61, 0.0
    %v67 = vadd.f32 %v65, %v66
    %v68 = vsel %vm64, %v63, 0.0
    %v69 = vadd.f32 %v67, %v68
    %v70 = vadd.f32 %v69, 1.0
    %v71 = vmul.f32 %v43, %v59
    %v72 = vmul.f32 %v44, %v61
    %v73 = vmul.f32 %v45, %v63
    %v74 = vsel %vm64, %v71, 0.0
    %v75 = vsel %vm64, %v72, 0.0
    %v76 = vadd.f32 %v74, %v75
    %v77 = vsel %vm64, %v73, 0.0
    %v78 = vadd.f32 %v76, %v77
    %v79 = vrcp.pop %v70
    %v80 = vmul.f32 %v78, %v79
    %v81 = vlog2.pop %v70
    %v82 = vmul.f32 %v81, 0.6931472
    %v83 = vsub.f32 0.0, %v82
    %84 = vst.msk [vmem:[#allocation7] sm:$0x3] %vm64, %v80
    %85 = vst.msk [vmem:[#allocation8] sm:$0x3] %vm64, %v83
    // Predicated region
    $region18: #{tpu_custom_call.1} parent=1 // pred_check
      _
    $region19: #{tpu_custom_call.1} parent=1 // pred_check_branch
      %87 = sbr.rel (0) target = $region21
    $region20: #{tpu_custom_call.1} parent=1 // pred_region
      %s89 = ssub.s32 32, 32
      %90 = vsyncadd [#allocation4], %s89
      %s92 = sshll.u32 [#allocation7], 4
      %s93 = int_to_ptr.vmem [resolvable:$true] %s92
      %95 = dma.vmem_to_hbm [thread:$0]  %s93, 32, %s2, [#allocation4]
    $region21: #{tpu_custom_call.1} parent=1 // pred_fallthru
      _
    // Predicated region
    $region22: #{tpu_custom_call.1} parent=1 // pred_check
      _
    $region23: #{tpu_custom_call.1} parent=1 // pred_check_branch
      %97 = sbr.rel (0) target = $region25
    $region24: #{tpu_custom_call.1} parent=1 // pred_region
      %s99 = ssub.s32 32, 32
      %100 = vsyncadd [#allocation9], %s99
      %s102 = sshll.u32 [#allocation8], 4
      %s103 = int_to_ptr.vmem [resolvable:$true] %s102
      %105 = dma.vmem_to_hbm [thread:$0]  %s103, 32, %s3, [#allocation9]
    $region25: #{tpu_custom_call.1} parent=1 // pred_fallthru
      _
    // Predicated region
    $region26: #{tpu_custom_call.1} parent=1 // pred_check
      _
    $region27: #{tpu_custom_call.1} parent=1 // pred_check_branch
      %107 = sbr.rel (0) target = $region29
    $region28: #{tpu_custom_call.1} parent=1 // pred_region
      %108 = dma.done [#allocation4], 32
    $region29: #{tpu_custom_call.1} parent=1 // pred_fallthru
      _
    // Predicated region
    $region30: #{tpu_custom_call.1} parent=1 // pred_check
      _
    $region31: #{tpu_custom_call.1} parent=1 // pred_check_branch
      %110 = sbr.rel (0) target = $region33
    $region32: #{tpu_custom_call.1} parent=1 // pred_region
      %111 = dma.done [#allocation9], 32
    $region33: #{tpu_custom_call.1} parent=1 // pred_fallthru
      _
    %112 = vsyncpa [#allocation3], 1
    %113 = vsyncpa [#allocation6], 1
    %114 = vsyncpa [#allocation4], 1
    %115 = vsyncpa [#allocation9], 1

</llo_original>
